<compile_context>
chip_gen: v7x
topology: tpu7x:2x2x1
jax: 0.10.0
libtpu: 0.0.40
codegen_flags: <defaults>
</compile_context>

<pallas_src>
import functools

import numpy as np
import jax
import jax.numpy as jnp
from jax import lax
from jax.experimental import pallas as pl
from jax.experimental.pallas import tpu as pltpu


# --------------------------------------------------------------------------- helpers
def _cdiv(a, b):
    return -(-a // b)


def _round_up(x, m):
    return _cdiv(x, m) * m


def _vmem_budget():
    """(per-grid-step tiling budget, Mosaic scoped-VMEM limit) in bytes."""
    try:
        cap = int(pltpu.get_tpu_info().vmem_capacity_bytes)
    except Exception:
        cap = 64 * 1024 * 1024            # conservative fallback (v7x per-core size)
    budget = (cap * 3) // 8               # ~24 MiB on v7x, ~48 MiB on v5e/v6e
    limit = min((cap * 3) // 4, 100 * 1024 * 1024)   # 48 MiB on v7x, 96 MiB on v5e/v6e
    return budget, limit


# --------------------------------------------------------------------------- endmember
def _endmember_kernel(q_ref, k_ref, o_ref, acc_ref, *, inv_temperature, c):
    kk = pl.program_id(1)

    @pl.when(kk == 0)
    def _():
        acc_ref[...] = jnp.zeros_like(acc_ref)

    # Batched contraction over the last (lane) dim of both operands:
    #   acc[b] += q_blk[b] @ k_blk[b]^T
    acc_ref[...] += lax.dot_general(
        q_ref[...], k_ref[...],
        dimension_numbers=(((2,), (2,)), ((0,), (0,))),
        preferred_element_type=jnp.float32)

    @pl.when(kk == pl.num_programs(1) - 1)
    def _():
        attn = acc_ref[...] * inv_temperature          # scale the small (c,c) output
        row = lax.broadcasted_iota(jnp.int32, (c, c), 0)
        col = lax.broadcasted_iota(jnp.int32, (c, c), 1)
        mask = (col >= row)[None, :, :]
        masked = jnp.where(mask, attn, -1e30)
        m = jnp.max(jnp.max(masked, axis=2, keepdims=True), axis=1, keepdims=True)
        e = jnp.exp(masked - m)                        # exp(-1e30 - m) flushes to 0
        s = jnp.sum(jnp.sum(e, axis=2, keepdims=True), axis=1, keepdims=True)
        o_ref[...] = (e / s).astype(o_ref.dtype)       # exact divide (cheap, EUP/VPU)


def _endmember_forward(q, k, temperature):
    b, c, h, w = q.shape
    hw = h * w
    q2 = q.reshape(b, c, hw)
    k2 = k.reshape(b, c, hw)
    itemsize = jnp.dtype(q.dtype).itemsize

    budget, vmem_limit = _vmem_budget()

    # Per-step VMEM footprint with (8,128) layout padding and f32 out/accumulator.
    c_sub = _round_up(c, 8)        # sublane padding of the c axis
    c_lane = _round_up(c, 128)     # lane padding of the (c, c) output minor axis

    def step_bytes(bt, tk):
        in_tile = bt * c_sub * _round_up(tk, 128) * itemsize   # one (bt, c, tk) block
        out_tile = bt * c_sub * c_lane * 4                     # f32 (bt, c, c) block
        return 4 * in_tile + 3 * out_tile  # 2 dbl-buffered inputs + dbl out + acc

    per_batch = step_bytes(1, hw)
    if per_batch <= budget:
        # Largest batch tile under the budget, but keep >= 2 batch steps so both
        # v7x TensorCores stream (grid is cdiv-based; tail zero-padded).
        bt = max(1, min(budget // per_batch, b))
        if b >= 2:
            bt = min(bt, _cdiv(b, 2))
        nk, tk, hw_pad = 1, hw, hw
    else:
        # K-tile the hw reduction axis ("arbitrary") with an f32 accumulator.
        bt = 1
        nk = 2
        while True:
            tk = _round_up(_cdiv(hw, nk), 128)
            if step_bytes(1, tk) <= budget or tk <= 128:
                break
            nk += 1
        hw_pad = nk * tk

    nb = _cdiv(b, bt)
    b_pad = nb * bt
    if b_pad != b or hw_pad != hw:
        pads = ((0, b_pad - b), (0, 0), (0, hw_pad - hw))
        q2 = jnp.pad(q2, pads)     # zero pad: no effect on the contraction; padded
        k2 = jnp.pad(k2, pads)     # batches are sliced off after the call

    kernel = functools.partial(
        _endmember_kernel, inv_temperature=1.0 / float(temperature), c=c)
    cost = pl.CostEstimate(
        flops=2 * b_pad * c * c * hw_pad,
        transcendentals=b_pad * c * c,
        bytes_accessed=2 * b_pad * c * hw_pad * itemsize + b_pad * c * c * 4)

    full = pl.pallas_call(
        kernel,
        out_shape=jax.ShapeDtypeStruct((b_pad, c, c), jnp.float32),
        grid=(nb, nk),
        in_specs=[pl.BlockSpec((bt, c, tk), lambda i, kk: (i, 0, kk)),
                  pl.BlockSpec((bt, c, tk), lambda i, kk: (i, 0, kk))],
        out_specs=pl.BlockSpec((bt, c, c), lambda i, kk: (i, 0, 0)),
        scratch_shapes=[pltpu.VMEM((bt, c, c), jnp.float32)],
        compiler_params=pltpu.CompilerParams(
            dimension_semantics=("parallel", "arbitrary"),
            vmem_limit_bytes=vmem_limit),
        cost_estimate=cost,
    )(q2, k2)

    full = full[:b]
    # Glue: gather the upper-triangle values (softmax already computed in-kernel).
    rr, cc = jnp.triu_indices(c)
    return full[:, rr, cc]                              # (b, c*(c+1)//2)


# --------------------------------------------------------------------------- non-endmember
def _pair_kernel(ii_ref, jj_ref, q_ref, k_ref, o_ref, m_ref, l_ref, *,
                 inv_temperature, num_pairs):
    s = pl.program_id(1)

    @pl.when(s == 0)
    def _():
        m_ref[...] = jnp.full_like(m_ref, -jnp.inf)
        l_ref[...] = jnp.zeros_like(l_ref)

    # Scores for this pair's (th, w) row tile: q[i, j][rows] @ k[j, i], scaled.
    a = lax.dot_general(
        q_ref[0, 0, :, :], k_ref[0, 0, :, :],
        dimension_numbers=(((1,), (0,)), ((), ())),
        preferred_element_type=jnp.float32) * inv_temperature     # (th, w)

    # Trip 1 (s in [0, num_pairs)): online max / sum-of-exp across the pair axis.
    @pl.when(s < num_pairs)
    def _():
        m_new = jnp.maximum(m_ref[...], a)
        l_ref[...] = l_ref[...] * jnp.exp(m_ref[...] - m_new) + jnp.exp(a - m_new)
        m_ref[...] = m_new

    # Trip 2 (s in [num_pairs, 2*num_pairs)): emit normalized softmax for pair p.
    @pl.when(s >= num_pairs)
    def _():
        o_ref[0, :, :] = (jnp.exp(a - m_ref[...]) / l_ref[...]).astype(o_ref.dtype)


def _non_endmember_forward(q, k, temperature):
    b, c, h, w = q.shape
    # torch.matmul broadcasting of (b,c,h,w) with k.transpose(0,1)=(c,b,h,w)
    # requires b == c, and the (h,w)@(h,w) matmul requires h == w.
    assert b == c and h == w, "non-endmember branch requires b == c and h == w"

    ii_np, jj_np = np.triu_indices(b)
    L = int(ii_np.shape[0])
    ii = jnp.asarray(ii_np, dtype=jnp.int32)
    jj = jnp.asarray(jj_np, dtype=jnp.int32)

    itemsize = jnp.dtype(q.dtype).itemsize
    budget, vmem_limit = _vmem_budget()

    # (8,128)-padded per-step footprint; output / scratch charged at f32.
    w_lane = _round_up(w, 128)
    k_tile = _round_up(h, 8) * w_lane

    def fits(th):
        q_tile = _round_up(th, 8) * w_lane
        used = 2 * q_tile * itemsize      # q block, double-buffered
        used += 2 * k_tile * itemsize     # k block, double-buffered
        used += 2 * q_tile * 4            # f32 output block, double-buffered
        used += 2 * q_tile * 4            # running max / sum scratch
        return used <= budget

    # Row tile over h: largest multiple of 8 dividing h with >= 2 tiles (so the
    # "parallel" axis feeds both v7x TensorCores); otherwise fall back to full h
    # (the 2*L pair-axis steps still pipeline the DMA).
    th = h
    for t in range(8, h // 2 + 1, 8):
        if h % t == 0 and fits(t):
            th = t
    nr = h // th

    def q_map(r, s, ii_ref, jj_ref):
        p = jnp.where(s < L, s, s - L)
        return (ii_ref[p], jj_ref[p], r, 0)

    def k_map(r, s, ii_ref, jj_ref):
        p = jnp.where(s < L, s, s - L)
        return (jj_ref[p], ii_ref[p], 0, 0)

    def o_map(r, s, ii_ref, jj_ref):
        # Trip 1 parks on block 0 (never written there); trip 2 writes block p.
        return (jnp.maximum(s - L, 0), r, 0)

    kernel = functools.partial(_pair_kernel,
                               inv_temperature=1.0 / float(temperature),
                               num_pairs=L)
    cost = pl.CostEstimate(
        flops=2 * (2 * L) * h * w * w,
        transcendentals=3 * L * h * w,
        bytes_accessed=2 * L * (h * w + nr * w * w) * itemsize + L * h * w * 4)

    return pl.pallas_call(
        kernel,
        out_shape=jax.ShapeDtypeStruct((L, h, w), jnp.float32),
        grid_spec=pltpu.PrefetchScalarGridSpec(
            num_scalar_prefetch=2,
            grid=(nr, 2 * L),
            in_specs=[pl.BlockSpec((1, 1, th, w), q_map),
                      pl.BlockSpec((1, 1, h, w), k_map)],
            out_specs=pl.BlockSpec((1, th, w), o_map),
            scratch_shapes=[pltpu.VMEM((th, w), jnp.float32),
                            pltpu.VMEM((th, w), jnp.float32)]),
        compiler_params=pltpu.CompilerParams(
            dimension_semantics=("parallel", "arbitrary"),
            vmem_limit_bytes=vmem_limit),
        cost_estimate=cost,
    )(ii, jj, q, k)


# --------------------------------------------------------------------------- public API
def scaled_dot_product_attention_only(k, q, endmember, temperature):
    """Pallas implementation of ScaledDotProductAttentionOnly.forward(k, q, endmember)."""
    if endmember:
        return _endmember_forward(q, k, temperature)
    return _non_endmember_forward(q, k, temperature)


if __name__ == "__main__":
    # Small shapes consistent with the module: b == c and h == w so both branches work.
    b, c, h, w = 4, 4, 16, 16
    temperature = float(np.sqrt(h * w))  # the module only stores this scalar

    key = jax.random.PRNGKey(0)
    key_q, key_k = jax.random.split(key)
    q = jax.random.normal(key_q, (b, c, h, w), dtype=jnp.float32)
    k = jax.random.normal(key_k, (b, c, h, w), dtype=jnp.float32)

    rr, cc = jnp.triu_indices(c)

    # --- endmember=True branch ---
    out_end = jax.block_until_ready(
        scaled_dot_product_attention_only(k, q, True, temperature))
    q2 = q.reshape(b, c, h * w)
    k2 = k.reshape(b, c, h * w)
    attn_ref = jnp.einsum('bce,bde->bcd', q2 / temperature, k2)
    ref_end = jax.nn.softmax(attn_ref[:, rr, cc], axis=-1)
    np.testing.assert_allclose(np.asarray(out_end), np.asarray(ref_end),
                               rtol=5e-3, atol=1e-5)

    # --- endmember=False branch ---
    out_ne = jax.block_until_ready(
        scaled_dot_product_attention_only(k, q, False, temperature))
    kt = jnp.transpose(k, (1, 0, 2, 3))
    attn_ref2 = jnp.einsum('ijhw,ijwk->ijhk', q / temperature, kt)
    ref_ne = jax.nn.softmax(attn_ref2[rr, cc], axis=0)
    np.testing.assert_allclose(np.asarray(out_ne), np.asarray(ref_ne),
                               rtol=5e-3, atol=1e-5)

    print("KERNEL_OK")
</pallas_src>

<mosaic_0001>
module attributes {stable_mosaic.version = 11 : i64} {
  func.func @_endmember_kernel(%arg0: i32, %arg1: i32, %arg2: memref<2x4x256xf32, #tpu.memory_space<vmem>>, %arg3: memref<2x4x256xf32, #tpu.memory_space<vmem>>, %arg4: memref<2x4x4xf32, #tpu.memory_space<vmem>>, %arg5: memref<2x4x4xf32, #tpu.memory_space<vmem>>) attributes {dimension_semantics = [#tpu.dimension_semantics<parallel>, #tpu.dimension_semantics<arbitrary>], iteration_bounds = array<i64: 2, 1>, scalar_prefetch = 0 : i64, scratch_operands = 1 : i64, tpu.core_type = #tpu.core_type<tc>, window_params = [{transform_indices = @transform_0, window_bounds = array<i64: 2, 4, 256>}, {transform_indices = @transform_1, window_bounds = array<i64: 2, 4, 256>}, {transform_indices = @transform_2, window_bounds = array<i64: 2, 4, 4>}]} {
    %c0_i32 = arith.constant 0 : i32
    %0 = arith.cmpi eq, %arg1, %c0_i32 : i32
    %1 = arith.extui %0 : i1 to i32
    %c0_i32_0 = arith.constant 0 : i32
    %2 = arith.cmpi ne, %1, %c0_i32_0 : i32
    scf.if %2 {
      %cst_14 = arith.constant 0.000000e+00 : f32
      %12 = vector.broadcast %cst_14 : f32 to vector<2x4x4xf32>
      %c0_15 = arith.constant 0 : index
      %c0_16 = arith.constant 0 : index
      %c0_17 = arith.constant 0 : index
      %13 = vector.load %arg5[%c0_15, %c0_16, %c0_17] : memref<2x4x4xf32, #tpu.memory_space<vmem>>, vector<2x4x4xf32>
      tpu.vector_store %arg5[%c0_15, %c0_16, %c0_17], %12 {strides = array<i32>} : memref<2x4x4xf32, #tpu.memory_space<vmem>>, vector<2x4x4xf32>,
    } else {
    }
    %c0 = arith.constant 0 : index
    %c0_1 = arith.constant 0 : index
    %c0_2 = arith.constant 0 : index
    %3 = vector.load %arg5[%c0, %c0_1, %c0_2] : memref<2x4x4xf32, #tpu.memory_space<vmem>>, vector<2x4x4xf32>
    %c0_3 = arith.constant 0 : index
    %c0_4 = arith.constant 0 : index
    %c0_5 = arith.constant 0 : index
    %4 = vector.load %arg2[%c0_3, %c0_4, %c0_5] : memref<2x4x256xf32, #tpu.memory_space<vmem>>, vector<2x4x256xf32>
    %c0_6 = arith.constant 0 : index
    %c0_7 = arith.constant 0 : index
    %c0_8 = arith.constant 0 : index
    %5 = vector.load %arg3[%c0_6, %c0_7, %c0_8] : memref<2x4x256xf32, #tpu.memory_space<vmem>>, vector<2x4x256xf32>
    %cst = arith.constant dense<0.000000e+00> : vector<2x4x4xf32>
    %6 = tpu.matmul %4, %5, %cst {dimension_numbers = #tpu.dot_dimension_numbers<[2], [2], [1], [1], [0, 0, 0, 1, 1, 1], [0], [0]>} : vector<2x4x256xf32>, vector<2x4x256xf32>, vector<2x4x4xf32> -> vector<2x4x4xf32>
    %7 = arith.addf %3, %6 : vector<2x4x4xf32>
    %c0_9 = arith.constant 0 : index
    %c0_10 = arith.constant 0 : index
    %c0_11 = arith.constant 0 : index
    %8 = vector.load %arg5[%c0_9, %c0_10, %c0_11] : memref<2x4x4xf32, #tpu.memory_space<vmem>>, vector<2x4x4xf32>
    tpu.vector_store %arg5[%c0_9, %c0_10, %c0_11], %7 {strides = array<i32>} : memref<2x4x4xf32, #tpu.memory_space<vmem>>, vector<2x4x4xf32>,
    %c0_i32_12 = arith.constant 0 : i32
    %9 = arith.cmpi eq, %arg1, %c0_i32_12 : i32
    %10 = arith.extui %9 : i1 to i32
    %c0_i32_13 = arith.constant 0 : i32
    %11 = arith.cmpi ne, %10, %c0_i32_13 : i32
    scf.if %11 {
      %c0_14 = arith.constant 0 : index
      %c0_15 = arith.constant 0 : index
      %c0_16 = arith.constant 0 : index
      %12 = vector.load %arg5[%c0_14, %c0_15, %c0_16] : memref<2x4x4xf32, #tpu.memory_space<vmem>>, vector<2x4x4xf32>
      %cst_17 = arith.constant 6.250000e-02 : f32
      %13 = vector.broadcast %cst_17 : f32 to vector<2x4x4xf32>
      %14 = arith.mulf %12, %13 : vector<2x4x4xf32>
      %15 = tpu.iota {dimensions = array<i32: 0>} : vector<4x4xi32>
      %16 = tpu.iota {dimensions = array<i32: 1>} : vector<4x4xi32>
      %17 = arith.cmpi sge, %16, %15 : vector<4x4xi32>
      %18 = vector.shape_cast %17 : vector<4x4xi1> to vector<1x4x4xi1>
      %cst_18 = arith.constant -1.000000e+30 : f32
      %19 = vector.shape_cast %18 : vector<1x4x4xi1> to vector<1x4x4xi1>
      %20 = vector.broadcast %19 : vector<1x4x4xi1> to vector<2x4x4xi1>
      %21 = vector.broadcast %cst_18 : f32 to vector<2x4x4xf32>
      %22 = arith.select %20, %14, %21 : vector<2x4x4xi1>, vector<2x4x4xf32>
      %cst_19 = arith.constant dense<0xFF800000> : vector<2x4xf32>
      %23 = vector.multi_reduction <maximumf>, %22, %cst_19 [2] : vector<2x4x4xf32> to vector<2x4xf32>
      %24 = vector.shape_cast %23 : vector<2x4xf32> to vector<2x4x1xf32>
      %cst_20 = arith.constant dense<0xFF800000> : vector<2x1xf32>
      %25 = vector.multi_reduction <maximumf>, %24, %cst_20 [1] : vector<2x4x1xf32> to vector<2x1xf32>
      %26 = vector.shape_cast %25 : vector<2x1xf32> to vector<2x1x1xf32>
      %27 = vector.broadcast %26 : vector<2x1x1xf32> to vector<2x4x4xf32>
      %28 = arith.subf %22, %27 : vector<2x4x4xf32>
      %29 = math.exp %28 : vector<2x4x4xf32>
      %cst_21 = arith.constant dense<0.000000e+00> : vector<2x4xf32>
      %30 = vector.multi_reduction <add>, %29, %cst_21 [2] : vector<2x4x4xf32> to vector<2x4xf32>
      %31 = vector.shape_cast %30 : vector<2x4xf32> to vector<2x4x1xf32>
      %cst_22 = arith.constant dense<0.000000e+00> : vector<2x1xf32>
      %32 = vector.multi_reduction <add>, %31, %cst_22 [1] : vector<2x4x1xf32> to vector<2x1xf32>
      %33 = vector.shape_cast %32 : vector<2x1xf32> to vector<2x1x1xf32>
      %34 = vector.broadcast %33 : vector<2x1x1xf32> to vector<2x4x4xf32>
      %35 = arith.divf %29, %34 : vector<2x4x4xf32>
      %c0_23 = arith.constant 0 : index
      %c0_24 = arith.constant 0 : index
      %c0_25 = arith.constant 0 : index
      %36 = vector.load %arg4[%c0_23, %c0_24, %c0_25] : memref<2x4x4xf32, #tpu.memory_space<vmem>>, vector<2x4x4xf32>
      tpu.vector_store %arg4[%c0_23, %c0_24, %c0_25], %35 {strides = array<i32>} : memref<2x4x4xf32, #tpu.memory_space<vmem>>, vector<2x4x4xf32>,
    } else {
    }
    return
  }
  func.func @transform_0(%arg0: i32, %arg1: i32) -> (i32, i32, i32) {
    %c0_i32 = arith.constant 0 : i32
    %c0_i32_0 = arith.constant 0 : i32
    return %arg0, %c0_i32, %arg1 : i32, i32, i32
  }
  func.func @transform_1(%arg0: i32, %arg1: i32) -> (i32, i32, i32) {
    %c0_i32 = arith.constant 0 : i32
    %c0_i32_0 = arith.constant 0 : i32
    return %arg0, %c0_i32, %arg1 : i32, i32, i32
  }
  func.func @transform_2(%arg0: i32, %arg1: i32) -> (i32, i32, i32) {
    %c0_i32 = arith.constant 0 : i32
    %c0_i32_0 = arith.constant 0 : i32
    %c0_i32_1 = arith.constant 0 : i32
    return %arg0, %c0_i32, %c0_i32_0 : i32, i32, i32
  }
}

</mosaic_0001>

<llo_original>
// kernel: tpu_custom_call.1
$region0: #{tpu_custom_call.1}
  #allocation0 [shape = 'u32[]', space=smem, size = 0x4, offset = 0x4, fixed_abs, tag = 'smem constant byte address 0x4 - core index']
  #allocation1 [shape = 'u32[144,128]{1,0:T(1,128)}', space=vmem, size = 0x12000, scoped, tag = 'internal scratch']
  #allocation2 [shape = 'f32[2,4,4]{2,1,0:T(4,128)}', space=vmem, size = 0x1000, scoped, tag = 'scratch operand']
  %s0 = inlined_call_operand.hbm [shape: f32[4,4,256], index: 0, kind: input, shape index: {}]
  %s1 = inlined_call_operand.hbm [shape: f32[4,4,256], index: 1, kind: input, shape index: {}]
  %s2 = inlined_call_operand.hbm [shape: f32[4,4,4], index: 2, kind: output, shape index: {}]
  %s3 = sld [smem:[#allocation0]]
  $region57: #{tpu_custom_call.1} parent=0
    _
  %s5 = ssub.s32 1, %s3
  %s6 = scalar_select 0, %s5, %s3
  $region1: #{tpu_custom_call.1} parent=0
    #allocation3 [shape = 'u8[16384]{0}', space=vmem, size = 0x4000, scoped, tag = 'input window, operand 0']
    #allocation4 [shape = 's32[2]{0}', space=sflag, size = 0x8, scoped, tag = 'scoped memory for tpu_custom_call.1']
    #allocation5 [shape = 's32[2]{0}', space=sflag, size = 0x8, scoped, tag = 'scoped memory for tpu_custom_call.1']
    #allocation6 [shape = 'u8[16384]{0}', space=vmem, size = 0x4000, scoped, tag = 'input window, operand 1']
    #allocation7 [shape = 's32[2]{0}', space=sflag, size = 0x8, scoped, tag = 'scoped memory for tpu_custom_call.1']
    #allocation8 [shape = 'u8[8192]{0}', space=vmem, size = 0x2000, scoped, tag = 'output window, operand 0']
    %7 = vsyncpa [#allocation4], 0
    %s8 = scalar_lea.sflag [#allocation4], 1
    %9 = vsyncpa %s8, 0
    %10 = vsyncpa [#allocation7], 0
    %s11 = scalar_lea.sflag [#allocation7], 1
    %12 = vsyncpa %s11, 0
    %13 = vsyncpa [#allocation5], 0
    %s14 = scalar_lea.sflag [#allocation5], 1
    %15 = vsyncpa %s14, 0
    loop: start=0, step=1, limit=4
    $region2: #{tpu_custom_call.1} parent=1 // loop_pre_header
      _
    $region3: #{tpu_custom_call.1} parent=1 // loop_header
      %s17 = sphi 0, %s21
      %p18 = scmp.ge.s32.totalorder %s17, 4
      %s24 = sphi 0, %s36
      %s25 = sphi 0, %s32
      %s26 = sphi 0, %s24
      %s27 = sphi 0, %s25
      %s28 = sphi 0, %s26
      %s29 = sphi 0, %s27
      %s41 = sphi 0, %s43
      %s44 = sphi 0, %s41
      %s45 = sphi 0, %s44
      %s61 = sphi 0, %s45
      %s69 = sphi 0, %s71
      %s72 = sphi 0, %s69
      %s73 = sphi 0, %s72
      %s89 = sphi 0, %s73
      %s95 = sphi 0, %s97
      %s98 = sphi 0, %s95
      %s99 = sphi 0, %s98
      %s115 = sphi 0, %s99
    $region4: #{tpu_custom_call.1} parent=1 // loop_header_branch
      %20 = sbr.rel (%p18) target = $region8
    $region5: #{tpu_custom_call.1} parent=1 // loop_body
      %s22 = ssub.s32 %s17, 1
      %s23 = ssub.s32 %s17, 2
      %s30 = sadd.s32 1, %s25
      %p31 = scmp.ge.s32.totalorder %s30, 1
      %s32 = scalar_select %p31, 0, %s30
      %s33 = sadd.s32 1, %s24
      %s34 = scalar_select %p31, %s33, %s24
      %p35 = scmp.ge.s32.totalorder %s34, 2
      %s36 = scalar_select %p35, 0, %s34
      %s37 = ssub.s32 %s24, %s36
      %s38 = ssub.s32 %s25, %s32
      %s39 = sor.u32 %s37, %s38
      %p40 = scmp.eq.s32.totalorder %s39, 0
      %s42 = sadd.s32 %s41, 1
      %s43 = scalar_select %p40, %s41, %s42
      %p46 = pneg %p40
      %p47 = scmp.eq.s32.totalorder %s17, 1
      %p48 = por %p46, %p47
      %p49 = scmp.ne.s32.totalorder %s41, %s44
      %p50 = scmp.eq.s32.totalorder %s17, 0
      %p51 = por %p49, %p50
      %p52 = scmp.ne.s32.totalorder %s41, %s44
      %p53 = scmp.eq.s32.totalorder %s22, 1
      %p54 = por %p52, %p53
      %p55 = scmp.ne.s32.totalorder %s44, %s45
      %p56 = scmp.eq.s32.totalorder %s22, 0
      %p57 = por %p55, %p56
      %p58 = scmp.ne.s32.totalorder %s44, %s45
      %p59 = scmp.eq.s32.totalorder %s23, 1
      %p60 = por %p58, %p59
      %p62 = scmp.ne.s32.totalorder %s45, %s61
      %p63 = scmp.eq.s32.totalorder %s23, 0
      %p64 = por %p62, %p63
      %s65 = ssub.s32 %s24, %s36
      %s66 = ssub.s32 %s25, %s32
      %s67 = sor.u32 %s65, %s66
      %p68 = scmp.eq.s32.totalorder %s67, 0
      %s70 = sadd.s32 %s69, 1
      %s71 = scalar_select %p68, %s69, %s70
      %p74 = pneg %p68
      %p75 = scmp.eq.s32.totalorder %s17, 1
      %p76 = por %p74, %p75
      %p77 = scmp.ne.s32.totalorder %s69, %s72
      %p78 = scmp.eq.s32.totalorder %s17, 0
      %p79 = por %p77, %p78
      %p80 = scmp.ne.s32.totalorder %s69, %s72
      %p81 = scmp.eq.s32.totalorder %s22, 1
      %p82 = por %p80, %p81
      %p83 = scmp.ne.s32.totalorder %s72, %s73
      %p84 = scmp.eq.s32.totalorder %s22, 0
      %p85 = por %p83, %p84
      %p86 = scmp.ne.s32.totalorder %s72, %s73
      %p87 = scmp.eq.s32.totalorder %s23, 1
      %p88 = por %p86, %p87
      %p90 = scmp.ne.s32.totalorder %s73, %s89
      %p91 = scmp.eq.s32.totalorder %s23, 0
      %p92 = por %p90, %p91
      %s93 = ssub.s32 %s24, %s36
      %p94 = scmp.eq.s32.totalorder %s93, 0
      %s96 = sadd.s32 %s95, 1
      %s97 = scalar_select %p94, %s95, %s96
      %p100 = pneg %p94
      %p101 = scmp.eq.s32.totalorder %s17, 1
      %p102 = por %p100, %p101
      %p103 = scmp.ne.s32.totalorder %s95, %s98
      %p104 = scmp.eq.s32.totalorder %s17, 0
      %p105 = por %p103, %p104
      %p106 = scmp.ne.s32.totalorder %s95, %s98
      %p107 = scmp.eq.s32.totalorder %s22, 1
      %p108 = por %p106, %p107
      %p109 = scmp.ne.s32.totalorder %s98, %s99
      %p110 = scmp.eq.s32.totalorder %s22, 0
      %p111 = por %p109, %p110
      %p112 = scmp.ne.s32.totalorder %s98, %s99
      %p113 = scmp.eq.s32.totalorder %s23, 1
      %p114 = por %p112, %p113
      %p116 = scmp.ne.s32.totalorder %s99, %s115
      %p117 = scmp.eq.s32.totalorder %s23, 0
      %p118 = por %p116, %p117
      %p119 = scmp.le.s32.totalorder 1, %s17
      %p120 = scmp.lt.s32.totalorder %s17, 3
      %p121 = pnand %p119, %p120
      %p122 = pneg %p121
      // Predicated region
      $region9: #{tpu_custom_call.1} parent=5 // pred_check
        _
      $region10: #{tpu_custom_call.1} parent=5 // pred_check_branch
        %124 = sbr.rel (%p121) target = $region12
      $region11: #{tpu_custom_call.1} parent=5 // pred_region
        %s125 = ssub.s32 %s17, 1
      $region12: #{tpu_custom_call.1} parent=5 // pred_fallthru
        _
      %p126 = scmp.lt.s32.totalorder %s17, 2
      // Predicated region
      $region13: #{tpu_custom_call.1} parent=5 // pred_check
        %p127 = pneg %p126
      $region14: #{tpu_custom_call.1} parent=5 // pred_check_branch
        %129 = sbr.rel (%p127) target = $region16
      $region15: #{tpu_custom_call.1} parent=5 // pred_region
        // Predicated region
        $region17: #{tpu_custom_call.1} parent=15 // pred_check
          %p130 = pneg %p51
        $region18: #{tpu_custom_call.1} parent=15 // pred_check_branch
          %132 = sbr.rel (%p130) target = $region20
        $region19: #{tpu_custom_call.1} parent=15 // pred_region
          %s133 = sand.u32 %s41, 1
          %s134 = scalar_lea.sflag [#allocation4], %s133
          %s135 = sand.u32 %s41, 1
          %s136 = smul.addr %s135, 16
          %s137 = scalar_lea.vmem [#allocation3], %s136
          %s138 = smul.u32 2, %s24
          %s139 = smul.u32 2, %s25
          %s141 = ssub.s32 256, 256
          %142 = vsyncadd %s134, %s141
          %s143 = smul.addr %s138, 2
          %s144 = sadd.s32 %s139, %s143
          %s145 = smul.addr %s144, 64
          %s146 = scalar_lea.hbm %s0, %s145
          %s147 = sshll.u32 %s137, 4
          %s148 = int_to_ptr.vmem [resolvable:$true] %s147
          %153 = dma.hbm_to_vmem [thread:$0]  %s146, 256, %s148, %s134, 128, 128, 8
        $region20: #{tpu_custom_call.1} parent=15 // pred_fallthru
          _
        // Predicated region
        $region21: #{tpu_custom_call.1} parent=15 // pred_check
          %p154 = pneg %p79
        $region22: #{tpu_custom_call.1} parent=15 // pred_check_branch
          %156 = sbr.rel (%p154) target = $region24
        $region23: #{tpu_custom_call.1} parent=15 // pred_region
          %s157 = sand.u32 %s69, 1
          %s158 = scalar_lea.sflag [#allocation7], %s157
          %s159 = sand.u32 %s69, 1
          %s160 = smul.addr %s159, 16
          %s161 = scalar_lea.vmem [#allocation6], %s160
          %s162 = smul.u32 2, %s24
          %s163 = smul.u32 2, %s25
          %s165 = ssub.s32 256, 256
          %166 = vsyncadd %s158, %s165
          %s167 = smul.addr %s162, 2
          %s168 = sadd.s32 %s163, %s167
          %s169 = smul.addr %s168, 64
          %s170 = scalar_lea.hbm %s1, %s169
          %s171 = sshll.u32 %s161, 4
          %s172 = int_to_ptr.vmem [resolvable:$true] %s171
          %177 = dma.hbm_to_vmem [thread:$0]  %s170, 256, %s172, %s158, 128, 128, 8
        $region24: #{tpu_custom_call.1} parent=15 // pred_fallthru
          _
      $region16: #{tpu_custom_call.1} parent=5 // pred_fallthru
        _
      %p178 = scmp.le.s32.totalorder 1, %s17
      %p179 = scmp.lt.s32.totalorder %s17, 3
      %p180 = pnand %p178, %p179
      %p181 = pneg %p180
      // Predicated region
      $region25: #{tpu_custom_call.1} parent=5 // pred_check
        _
      $region26: #{tpu_custom_call.1} parent=5 // pred_check_branch
        %183 = sbr.rel (%p180) target = $region28
      $region27: #{tpu_custom_call.1} parent=5 // pred_region
        %s184 = ssub.s32 %s17, 1
        %s185 = sand.u32 %s44, 1
        %s186 = scalar_lea.sflag [#allocation4], %s185
        %s187 = sand.u32 %s44, 1
        %s188 = smul.addr %s187, 16
        %s189 = scalar_lea.vmem [#allocation3], %s188
        // Predicated region
        $region29: #{tpu_custom_call.1} parent=27 // pred_check
          %p190 = pneg %p57
        $region30: #{tpu_custom_call.1} parent=27 // pred_check_branch
          %192 = sbr.rel (%p190) target = $region32
        $region31: #{tpu_custom_call.1} parent=27 // pred_region
          %193 = dma.done %s186, 256
        $region32: #{tpu_custom_call.1} parent=27 // pred_fallthru
          _
        %s194 = sand.u32 %s72, 1
        %s195 = scalar_lea.sflag [#allocation7], %s194
        %s196 = sand.u32 %s72, 1
        %s197 = smul.addr %s196, 16
        %s198 = scalar_lea.vmem [#allocation6], %s197
        // Predicated region
        $region33: #{tpu_custom_call.1} parent=27 // pred_check
          %p199 = pneg %p85
        $region34: #{tpu_custom_call.1} parent=27 // pred_check_branch
          %201 = sbr.rel (%p199) target = $region36
        $region35: #{tpu_custom_call.1} parent=27 // pred_region
          %202 = dma.done %s195, 256
        $region36: #{tpu_custom_call.1} parent=27 // pred_fallthru
          _
        %s203 = sand.u32 %s44, 1
        %s204 = scalar_lea.sflag [#allocation4], %s203
        %s205 = sand.u32 %s44, 1
        %s206 = smul.addr %s205, 16
        %s207 = scalar_lea.vmem [#allocation3], %s206
        %p208 = pneg %p57
        %p209 = pneg %p54
        %s210 = sand.u32 %s72, 1
        %s211 = scalar_lea.sflag [#allocation7], %s210
        %s212 = sand.u32 %s72, 1
        %s213 = smul.addr %s212, 16
        %s214 = scalar_lea.vmem [#allocation6], %s213
        %p215 = pneg %p85
        %p216 = pneg %p82
        %p217 = pneg %p111
        %p218 = pneg %p108
        %s219 = sand.u32 %s98, 1
        %s220 = scalar_lea.sflag [#allocation5], %s219
        %s221 = sand.u32 %s98, 1
        %s222 = smul.addr %s221, 8
        %s223 = scalar_lea.vmem [#allocation8], %s222
        %s224 = smul.u32 2, %s26
        %s225 = smul.u32 2, %s27
        %s226 = smul.u32 2, %s26
        %s227 = smul.u32 2, %s27
        %s228 = smul.u32 2, %s26
        %p229 = scmp.eq.s32.totalorder %s27, 0
        // Predicated region
        $region37: #{tpu_custom_call.1} parent=27 // pred_check
          %p230 = pneg %p229
        $region38: #{tpu_custom_call.1} parent=27 // pred_check_branch
          %232 = sbr.rel (%p230) target = $region40
        $region39: #{tpu_custom_call.1} parent=27 // pred_region
          %vm233 = vcmask 27648
          %234 = vst.msk [vmem:[#allocation2] sm:$0xf] %vm233, 0.0
          %235 = vst.msk [vmem:[#allocation2 + $0x4] sm:$0xf] %vm233, 0.0
        $region40: #{tpu_custom_call.1} parent=27 // pred_fallthru
          _
        %v236 = vld [vmem:[#allocation2] sm:$0xf]
        %v237 = vld [vmem:[#allocation2 + $0x4] sm:$0xf]
        %v238 = vld [vmem:[%s189] sm:$0xff]
        %v239 = vld [vmem:[%s189 + $0x8] sm:$0xff]
        %v240 = vld [vmem:[%s198] sm:$0xff]
        %v241 = vld [vmem:[%s198 + $0x8] sm:$0xff]
        %v243 = vcombine.high %v238, %v238
        %v246 = vcombine.high %v240, %v240
        %248 = vmatprep.subr.mxu0 %v246
        %249 = vmatpush1.xpose.msra.mxu0 %v240
        %250 = vmatprep.subr.mxu0 0.0
        %251 = vmatpush1.xpose.msra.mxu0 0.0
        %252 = vmatprep.subr.mxu0 0.0
        %253 = vmatpush1.xpose.msra.mxu0 0.0
        %254 = vmatprep.subr.mxu0 0.0
        %255 = vmatpush1.xpose.msra.mxu0 0.0
        %256 = vmatprep.subr.mxu0 0.0
        %257 = vmatpush1.xpose.msra.mxu0 0.0
        %258 = vmatprep.subr.mxu0 0.0
        %259 = vmatpush1.xpose.msra.mxu0 0.0
        %260 = vmatprep.subr.mxu0 0.0
        %261 = vmatpush1.xpose.msra.mxu0 0.0
        %262 = vmatprep.subr.mxu0 0.0
        %263 = vmatpush1.xpose.msra.mxu0 0.0
        %264 = vmatprep.subr.mxu0 0.0
        %265 = vmatpush1.xpose.msra.mxu0 0.0
        %266 = vmatprep.subr.mxu0 0.0
        %267 = vmatpush1.xpose.msra.mxu0 0.0
        %268 = vmatprep.subr.mxu0 0.0
        %269 = vmatpush1.xpose.msra.mxu0 0.0
        %270 = vmatprep.subr.mxu0 0.0
        %271 = vmatpush1.xpose.msra.mxu0 0.0
        %272 = vmatprep.subr.mxu0 0.0
        %273 = vmatpush1.xpose.msra.mxu0 0.0
        %274 = vmatprep.subr.mxu0 0.0
        %275 = vmatpush1.xpose.msra.mxu0 0.0
        %276 = vmatprep.subr.mxu0 0.0
        %277 = vmatpush1.xpose.msra.mxu0 0.0
        %278 = vmatprep.subr.mxu0 0.0
        %279 = vmatpush1.xpose.msra.mxu0 0.0
        %280 = vmatprep.subr.mxu0 0.0
        %281 = vmatpush1.xpose.msra.mxu0 0.0
        %282 = vmatprep.subr.mxu0 0.0
        %283 = vmatpush1.xpose.msra.mxu0 0.0
        %284 = vmatprep.subr.mxu0 0.0
        %285 = vmatpush1.xpose.msra.mxu0 0.0
        %286 = vmatprep.subr.mxu0 0.0
        %287 = vmatpush1.xpose.msra.mxu0 0.0
        %288 = vmatprep.subr.mxu0 0.0
        %289 = vmatpush1.xpose.msra.mxu0 0.0
        %290 = vmatprep.subr.mxu0 0.0
        %291 = vmatpush1.xpose.msra.mxu0 0.0
        %292 = vmatprep.subr.mxu0 0.0
        %293 = vmatpush1.xpose.msra.mxu0 0.0
        %294 = vmatprep.subr.mxu0 0.0
        %295 = vmatpush1.xpose.msra.mxu0 0.0
        %296 = vmatprep.subr.mxu0 0.0
        %297 = vmatpush1.xpose.msra.mxu0 0.0
        %298 = vmatprep.subr.mxu0 0.0
        %299 = vmatpush1.xpose.msra.mxu0 0.0
        %300 = vmatprep.subr.mxu0 0.0
        %301 = vmatpush1.xpose.msra.mxu0 0.0
        %302 = vmatprep.subr.mxu0 0.0
        %303 = vmatpush1.xpose.msra.mxu0 0.0
        %304 = vmatprep.subr.mxu0 0.0
        %305 = vmatpush1.xpose.msra.mxu0 0.0
        %306 = vmatprep.subr.mxu0 0.0
        %307 = vmatpush1.xpose.msra.mxu0 0.0
        %308 = vmatprep.subr.mxu0 0.0
        %309 = vmatpush1.xpose.msra.mxu0 0.0
        %310 = vmatprep.subr.mxu0 0.0
        %311 = vmatpush1.xpose.msra.mxu0 0.0
        %312 = vmatprep.mubr.f32.mxu0 %v243
        %313 = vmatmul.mubr.f32.gmra.mrb[0].mxu0 %v238
        %v314 = vpop.f32.mrb[0].mxu0
        %v315 = vadd.f32 0.0, %v314
        %v316 = vpop.f32.mrb[0].mxu0
        %317 = vdwg.mxu0
        %v319 = vcombine.high %v239, %v239
        %v322 = vcombine.high %v241, %v241
        %324 = vmatprep.subr.mxu0 %v322
        %325 = vmatpush1.xpose.msra.mxu0 %v241
        %326 = vmatprep.subr.mxu0 0.0
        %327 = vmatpush1.xpose.msra.mxu0 0.0
        %328 = vmatprep.subr.mxu0 0.0
        %329 = vmatpush1.xpose.msra.mxu0 0.0
        %330 = vmatprep.subr.mxu0 0.0
        %331 = vmatpush1.xpose.msra.mxu0 0.0
        %332 = vmatprep.subr.mxu0 0.0
        %333 = vmatpush1.xpose.msra.mxu0 0.0
        %334 = vmatprep.subr.mxu0 0.0
        %335 = vmatpush1.xpose.msra.mxu0 0.0
        %336 = vmatprep.subr.mxu0 0.0
        %337 = vmatpush1.xpose.msra.mxu0 0.0
        %338 = vmatprep.subr.mxu0 0.0
        %339 = vmatpush1.xpose.msra.mxu0 0.0
        %340 = vmatprep.subr.mxu0 0.0
        %341 = vmatpush1.xpose.msra.mxu0 0.0
        %342 = vmatprep.subr.mxu0 0.0
        %343 = vmatpush1.xpose.msra.mxu0 0.0
        %344 = vmatprep.subr.mxu0 0.0
        %345 = vmatpush1.xpose.msra.mxu0 0.0
        %346 = vmatprep.subr.mxu0 0.0
        %347 = vmatpush1.xpose.msra.mxu0 0.0
        %348 = vmatprep.subr.mxu0 0.0
        %349 = vmatpush1.xpose.msra.mxu0 0.0
        %350 = vmatprep.subr.mxu0 0.0
        %351 = vmatpush1.xpose.msra.mxu0 0.0
        %352 = vmatprep.subr.mxu0 0.0
        %353 = vmatpush1.xpose.msra.mxu0 0.0
        %354 = vmatprep.subr.mxu0 0.0
        %355 = vmatpush1.xpose.msra.mxu0 0.0
        %356 = vmatprep.subr.mxu0 0.0
        %357 = vmatpush1.xpose.msra.mxu0 0.0
        %358 = vmatprep.subr.mxu0 0.0
        %359 = vmatpush1.xpose.msra.mxu0 0.0
        %360 = vmatprep.subr.mxu0 0.0
        %361 = vmatpush1.xpose.msra.mxu0 0.0
        %362 = vmatprep.subr.mxu0 0.0
        %363 = vmatpush1.xpose.msra.mxu0 0.0
        %364 = vmatprep.subr.mxu0 0.0
        %365 = vmatpush1.xpose.msra.mxu0 0.0
        %366 = vmatprep.subr.mxu0 0.0
        %367 = vmatpush1.xpose.msra.mxu0 0.0
        %368 = vmatprep.subr.mxu0 0.0
        %369 = vmatpush1.xpose.msra.mxu0 0.0
        %370 = vmatprep.subr.mxu0 0.0
        %371 = vmatpush1.xpose.msra.mxu0 0.0
        %372 = vmatprep.subr.mxu0 0.0
        %373 = vmatpush1.xpose.msra.mxu0 0.0
        %374 = vmatprep.subr.mxu0 0.0
        %375 = vmatpush1.xpose.msra.mxu0 0.0
        %376 = vmatprep.subr.mxu0 0.0
        %377 = vmatpush1.xpose.msra.mxu0 0.0
        %378 = vmatprep.subr.mxu0 0.0
        %379 = vmatpush1.xpose.msra.mxu0 0.0
        %380 = vmatprep.subr.mxu0 0.0
        %381 = vmatpush1.xpose.msra.mxu0 0.0
        %382 = vmatprep.subr.mxu0 0.0
        %383 = vmatpush1.xpose.msra.mxu0 0.0
        %384 = vmatprep.subr.mxu0 0.0
        %385 = vmatpush1.xpose.msra.mxu0 0.0
        %386 = vmatprep.subr.mxu0 0.0
        %387 = vmatpush1.xpose.msra.mxu0 0.0
        %388 = vmatprep.mubr.f32.mxu0 %v319
        %389 = vmatmul.mubr.f32.gmra.mrb[0].mxu0 %v239
        %v390 = vpop.f32.mrb[0].mxu0
        %v391 = vadd.f32 0.0, %v390
        %v392 = vpop.f32.mrb[0].mxu0
        %393 = vdwg.mxu0
        %v394 = vadd.f32 %v236, %v315
        %v395 = vadd.f32 %v237, %v391
        %vm396 = vcmask 27648
        %397 = vst.msk [vmem:[#allocation2] sm:$0xf] %vm396, %v394
        %398 = vst.msk [vmem:[#allocation2 + $0x4] sm:$0xf] %vm396, %v395
        // Predicated region
        $region41: #{tpu_custom_call.1} parent=27 // pred_check
          %p399 = pneg %p229
        $region42: #{tpu_custom_call.1} parent=27 // pred_check_branch
          %401 = sbr.rel (%p399) target = $region44
        $region43: #{tpu_custom_call.1} parent=27 // pred_region
          %v402 = vld [vmem:[#allocation2] sm:$0xf]
          %v403 = vld [vmem:[#allocation2 + $0x4] sm:$0xf]
          %v404 = vmul.f32 %v402, 0.0625
          %v405 = vmul.f32 %v403, 0.0625
          %v406 = vlaneseq
          %v407 = vshrl.u32 %v406, 7
          %v408 = vlaneseq
          %v409 = vand.u32 %v408, 127
          %vm410 = vcmp.ge.s32.totalorder %v409, %v407
          %v411 = vsel %vm410, 1, 0
          %vm412 = vcmp.eq.s32.totalorder %v411, 1
          %v413 = vsel %vm412, %v404, -1e+30
          %v414 = vsel %vm412, %v405, -1e+30
          %v415 = vsel %vm396, %v413, -inf
          %416 = vmax.xlane.f32.xlu0 %v415
          %v417 = vpop.xlane.xlu0 %416
          %v418 = vsel %vm396, %v414, -inf
          %419 = vmax.xlane.f32.xlu0 %v418
          %v420 = vpop.xlane.xlu0 %419
          %vm421 = vcmask 1043456
          %v422 = vsel %vm421, %v417, -inf
          %v423 = vrot.slane %v422, 4
          %v424 = vmax.f32 %v422, %v423
          %v425 = vrot.slane %v424, 2
          %v426 = vmax.f32 %v424, %v425
          %v427 = vrot.slane %v426, 1
          %v428 = vmax.f32 %v426, %v427
          %v429 = vsel %vm421, %v420, -inf
          %v430 = vrot.slane %v429, 4
          %v431 = vmax.f32 %v429, %v430
          %v432 = vrot.slane %v431, 2
          %v433 = vmax.f32 %v431, %v432
          %v434 = vrot.slane %v433, 1
          %v435 = vmax.f32 %v433, %v434
          %v436 = vsub.f32 %v413, %v428
          %v437 = vsub.f32 %v414, %v435
          %v438 = vmul.f32 %v436, 1.442695
          %v439 = vpow.pop %v438
          %v440 = vmul.f32 %v437, 1.442695
          %v441 = vpow.pop %v440
          %v442 = vsel %vm396, %v439, 0.0
          %443 = vadd.xlane.f32.xlu0 %v442
          %v444 = vpop.xlane.xlu0 %443
          %v445 = vsel %vm396, %v441, 0.0
          %446 = vadd.xlane.f32.xlu0 %v445
          %v447 = vpop.xlane.xlu0 %446
          %v448 = vsel %vm421, %v444, 0.0
          %v449 = vrot.slane %v448, 4
          %v450 = vadd.f32 %v448, %v449
          %v451 = vrot.slane %v450, 2
          %v452 = vadd.f32 %v450, %v451
          %v453 = vrot.slane %v452, 1
          %v454 = vadd.f32 %v452, %v453
          %v455 = vsel %vm421, %v447, 0.0
          %v456 = vrot.slane %v455, 4
          %v457 = vadd.f32 %v455, %v456
          %v458 = vrot.slane %v457, 2
          %v459 = vadd.f32 %v457, %v458
          %v460 = vrot.slane %v459, 1
          %v461 = vadd.f32 %v459, %v460
          %v462 = vrcp.pop %v454
          %v463 = vmul.f32 %v439, %v462
          %v464 = vrcp.pop %v461
          %v465 = vmul.f32 %v441, %v464
          %466 = vst.msk [vmem:[%s223] sm:$0xf] %vm396, %v463
          %467 = vst.msk [vmem:[%s223 + $0x4] sm:$0xf] %vm396, %v465
        $region44: #{tpu_custom_call.1} parent=27 // pred_fallthru
          _
        %s468 = sand.u32 %s98, 1
        %s469 = scalar_lea.sflag [#allocation5], %s468
        %s470 = sand.u32 %s98, 1
        %s471 = smul.addr %s470, 8
        %s472 = scalar_lea.vmem [#allocation8], %s471
        // Predicated region
        $region45: #{tpu_custom_call.1} parent=27 // pred_check
          %p473 = pneg %p108
        $region46: #{tpu_custom_call.1} parent=27 // pred_check_branch
          %475 = sbr.rel (%p473) target = $region48
        $region47: #{tpu_custom_call.1} parent=27 // pred_region
          %s476 = smul.u32 2, %s26
          %s478 = ssub.s32 128, 128
          %479 = vsyncadd %s469, %s478
          %s480 = smul.addr %s476, 64
          %s481 = scalar_lea.hbm %s2, %s480
          %s482 = sshll.u32 %s472, 4
          %s483 = int_to_ptr.vmem [resolvable:$true] %s482
          %488 = dma.vmem_to_hbm [thread:$0]  %s483, 128, %s481, %s469, 64, 64, 4
        $region48: #{tpu_custom_call.1} parent=27 // pred_fallthru
          _
      $region28: #{tpu_custom_call.1} parent=5 // pred_fallthru
        _
      %p489 = scmp.le.s32.totalorder 2, %s17
      // Predicated region
      $region49: #{tpu_custom_call.1} parent=5 // pred_check
        %p490 = pneg %p489
      $region50: #{tpu_custom_call.1} parent=5 // pred_check_branch
        %492 = sbr.rel (%p490) target = $region52
      $region51: #{tpu_custom_call.1} parent=5 // pred_region
        %s493 = ssub.s32 %s17, 2
        // Predicated region
        $region53: #{tpu_custom_call.1} parent=51 // pred_check
          %p494 = pneg %p114
        $region54: #{tpu_custom_call.1} parent=51 // pred_check_branch
          %496 = sbr.rel (%p494) target = $region56
        $region55: #{tpu_custom_call.1} parent=51 // pred_region
          %s497 = sand.u32 %s99, 1
          %s498 = scalar_lea.sflag [#allocation5], %s497
          %s499 = sand.u32 %s99, 1
          %s500 = smul.addr %s499, 8
          %s501 = scalar_lea.vmem [#allocation8], %s500
          %502 = dma.done %s498, 128
        $region56: #{tpu_custom_call.1} parent=51 // pred_fallthru
          _
      $region52: #{tpu_custom_call.1} parent=5 // pred_fallthru
        _
    $region6: #{tpu_custom_call.1} parent=1 // loop_footer
      %s21 = sadd.s32 1, %s17
    $region7: #{tpu_custom_call.1} parent=1 // loop_footer_branch
      %16 = sbr.rel target = $region3
    $region8: #{tpu_custom_call.1} parent=1 // loop_exit
      _
    %503 = vsyncpa [#allocation4], 1
    %s504 = scalar_lea.sflag [#allocation4], 1
    %505 = vsyncpa %s504, 1
    %506 = vsyncpa [#allocation7], 1
    %s507 = scalar_lea.sflag [#allocation7], 1
    %508 = vsyncpa %s507, 1
    %509 = vsyncpa [#allocation5], 1
    %s510 = scalar_lea.sflag [#allocation5], 1
    %511 = vsyncpa %s510, 1

</llo_original>
